<compile_context>
chip_gen: v7x
topology: tpu7x:2x2x1
jax: 0.10.0
libtpu: 0.0.40
codegen_flags: <defaults>
</compile_context>

<pallas_src>
import math

import jax
import jax.numpy as jnp
from jax.experimental import pallas as pl
from jax.experimental.pallas import tpu as pltpu


def _copy_kernel(x_ref, o_ref):
    # Identity copy of the current (tile_rows, lanes) tile.
    o_ref[...] = x_ref[...]


def _sublane_multiple(itemsize):
    # Packed sublane multiple: f32 -> 8, bf16/f16 -> 16, int8/fp8 -> 32.
    return max(8, 8 * (4 // max(1, itemsize)))


def _pick_lanes(total, sub):
    """Largest lane width (multiple of 128) dividing `total`, preferring one
    that also leaves a sublane-aligned row count."""
    best = None
    for cand in (1024, 512, 256, 128):
        if total % cand != 0:
            continue
        if (total // cand) % sub == 0:
            return cand
        if best is None:
            best = cand
    return best


def _vmem_budget():
    """Per-generation (tile_budget_bytes, vmem_limit_bytes)."""
    try:
        vmem = int(pltpu.get_tpu_info().vmem_capacity_bytes)
    except Exception:
        vmem = 64 * 1024 * 1024  # conservative: assume v7x-sized VMEM
    if vmem >= 96 * 1024 * 1024:
        # v5e / v6e: 128 MiB physical VMEM -> bigger tiles, fewer grid steps.
        return 16 * 1024 * 1024, 96 * 1024 * 1024
    # v7x: 64 MiB physical VMEM per TensorCore.
    return 8 * 1024 * 1024, 40 * 1024 * 1024


def reshape_layer(x, target_shape, *, min_kernel_bytes=1 << 20, force_kernel=False):
    """Pallas implementation of ReshapeLayer.forward.

    Args:
      x: input array, shape (B, ...).
      target_shape: desired output shape excluding the batch dimension.
      min_kernel_bytes: below this total size the metadata-only reshape is
        returned directly (launch overhead would exceed any benefit).
      force_kernel: force the Pallas copy path even for small tensors
        (used by the self-test to exercise the kernel).
    Returns:
      array of shape (B, *target_shape), same element ordering as torch .view.
    """
    batch = x.shape[0]
    feat = math.prod(x.shape[1:])
    tgt_feat = math.prod(target_shape)
    assert feat == tgt_feat, (
        f"cannot reshape {x.shape[1:]} (={feat}) into {target_shape} (={tgt_feat})"
    )

    itemsize = jnp.dtype(x.dtype).itemsize
    total = batch * feat
    total_bytes = total * itemsize
    sub = _sublane_multiple(itemsize)
    lanes = _pick_lanes(total, sub)

    # A reshape is metadata-only in XLA: for small or lane-misaligned tensors
    # the optimal "kernel" is no kernel at all.
    if lanes is None or (total_bytes < min_kernel_bytes and not force_kernel):
        return x.reshape(batch, *target_shape)

    rows = total // lanes
    # Row-major flatten to a lane-dense slab matches torch .view ordering.
    x2d = x.reshape(rows, lanes)

    tile_budget, vmem_limit = _vmem_budget()
    # Copy uses 1 input + 1 output tile, double-buffered => ~4x tile bytes
    # resident; budgets above keep that well inside physical VMEM.
    max_rows = max(sub, (tile_budget // (lanes * itemsize)) // sub * sub)

    if rows % sub == 0:
        tile_rows = min(max_rows, rows)
        # Keep >= 2 grid steps so the "parallel" axis can shard the copy
        # across v7x's two TensorCores.
        if tile_rows == rows and rows >= 2 * sub:
            tile_rows = pl.cdiv(pl.cdiv(rows, 2), sub) * sub
    else:
        # Ragged row count: full-extent single block if it fits the budget,
        # otherwise sublane-aligned tiles with a masked ragged final block.
        tile_rows = rows if rows <= max_rows else max_rows

    grid = (pl.cdiv(rows, tile_rows),)

    out2d = pl.pallas_call(
        _copy_kernel,
        out_shape=jax.ShapeDtypeStruct((rows, lanes), x.dtype),
        grid=grid,
        in_specs=[pl.BlockSpec((tile_rows, lanes), lambda i: (i, 0))],
        out_specs=pl.BlockSpec((tile_rows, lanes), lambda i: (i, 0)),
        compiler_params=pltpu.CompilerParams(
            dimension_semantics=("parallel",),
            vmem_limit_bytes=vmem_limit,
        ),
        cost_estimate=pl.CostEstimate(
            flops=0,
            transcendentals=0,
            bytes_accessed=2 * rows * lanes * itemsize,
        ),
    )(x2d)

    # Metadata-only reshape to the requested output shape.
    return out2d.reshape(batch, *target_shape)


if __name__ == "__main__":
    key = jax.random.PRNGKey(0)
    k1, k2 = jax.random.split(key)

    # --- Test 1: the module's natural small input (metadata-only fast path) ---
    # ReshapeLayer(shape=(16, 64)): (2, 4, 16, 16) -> (2, 16, 64)
    x1 = jax.random.normal(k1, (2, 4, 16, 16), dtype=jnp.float32)
    y1 = jax.block_until_ready(reshape_layer(x1, (16, 64)))
    ref1 = x1.reshape(2, 16, 64)
    assert y1.shape == (2, 16, 64), y1.shape
    assert y1.dtype == x1.dtype
    assert bool(jnp.array_equal(y1, ref1))

    # --- Test 2: exercise the Pallas copy kernel (forced) ------------------
    # ReshapeLayer(shape=(64, 128)): (4, 8, 32, 32) -> (4, 64, 128)
    x2 = jax.random.normal(k2, (4, 8, 32, 32), dtype=jnp.float32)
    y2 = jax.block_until_ready(reshape_layer(x2, (64, 128), force_kernel=True))
    ref2 = x2.reshape(4, 64, 128)
    assert y2.shape == (4, 64, 128), y2.shape
    assert y2.dtype == x2.dtype
    assert bool(jnp.array_equal(y2, ref2))

    print("KERNEL_OK")
</pallas_src>

<mosaic_0001>
module attributes {stable_mosaic.version = 11 : i64} {
  func.func @_copy_kernel(%arg0: i32, %arg1: memref<16x1024xf32, #tpu.memory_space<vmem>>, %arg2: memref<16x1024xf32, #tpu.memory_space<vmem>>) attributes {dimension_semantics = [#tpu.dimension_semantics<parallel>], iteration_bounds = array<i64: 2>, scalar_prefetch = 0 : i64, scratch_operands = 0 : i64, tpu.core_type = #tpu.core_type<tc>, window_params = [{transform_indices = @transform_0, window_bounds = array<i64: 16, 1024>}, {transform_indices = @transform_1, window_bounds = array<i64: 16, 1024>}]} {
    %c0 = arith.constant 0 : index
    %c0_0 = arith.constant 0 : index
    %0 = vector.load %arg1[%c0, %c0_0] : memref<16x1024xf32, #tpu.memory_space<vmem>>, vector<16x1024xf32>
    %c0_1 = arith.constant 0 : index
    %c0_2 = arith.constant 0 : index
    %1 = vector.load %arg2[%c0_1, %c0_2] : memref<16x1024xf32, #tpu.memory_space<vmem>>, vector<16x1024xf32>
    tpu.vector_store %arg2[%c0_1, %c0_2], %0 {strides = array<i32>} : memref<16x1024xf32, #tpu.memory_space<vmem>>, vector<16x1024xf32>,
    return
  }
  func.func @transform_0(%arg0: i32) -> (i32, i32) {
    %c0_i32 = arith.constant 0 : i32
    %c0_i32_0 = arith.constant 0 : i32
    return %arg0, %c0_i32 : i32, i32
  }
  func.func @transform_1(%arg0: i32) -> (i32, i32) {
    %c0_i32 = arith.constant 0 : i32
    %c0_i32_0 = arith.constant 0 : i32
    return %arg0, %c0_i32 : i32, i32
  }
}

</mosaic_0001>

<llo_original>
// kernel: tpu_custom_call.1
$region0: #{tpu_custom_call.1}
  #allocation0 [shape = 'u32[]', space=smem, size = 0x4, offset = 0x4, fixed_abs, tag = 'smem constant byte address 0x4 - core index']
  #allocation1 [shape = 'u32[144,128]{1,0:T(1,128)}', space=vmem, size = 0x12000, scoped, tag = 'internal scratch']
  %s0 = inlined_call_operand.hbm [shape: f32[32,1024], index: 0, kind: input, shape index: {}]
  %s1 = inlined_call_operand.hbm [shape: f32[32,1024], index: 1, kind: output, shape index: {}]
  %s2 = sld [smem:[#allocation0]]
  $region41: #{tpu_custom_call.1} parent=0
    _
  %s4 = ssub.s32 1, %s2
  %s5 = scalar_select 0, %s4, %s2
  $region1: #{tpu_custom_call.1} parent=0
    #allocation2 [shape = 'u8[131072]{0}', space=vmem, size = 0x20000, scoped, tag = 'input window, operand 0']
    #allocation3 [shape = 's32[2]{0}', space=sflag, size = 0x8, scoped, tag = 'scoped memory for tpu_custom_call.1']
    #allocation4 [shape = 's32[2]{0}', space=sflag, size = 0x8, scoped, tag = 'scoped memory for tpu_custom_call.1']
    #allocation5 [shape = 'u8[131072]{0}', space=vmem, size = 0x20000, scoped, tag = 'output window, operand 0']
    %6 = vsyncpa [#allocation3], 0
    %s7 = scalar_lea.sflag [#allocation3], 1
    %8 = vsyncpa %s7, 0
    %9 = vsyncpa [#allocation4], 0
    %s10 = scalar_lea.sflag [#allocation4], 1
    %11 = vsyncpa %s10, 0
    loop: start=0, step=1, limit=4
    $region2: #{tpu_custom_call.1} parent=1 // loop_pre_header
      _
    $region3: #{tpu_custom_call.1} parent=1 // loop_header
      %s13 = sphi 0, %s17
      %p14 = scmp.ge.s32.totalorder %s13, 4
      %s23 = sphi 0, %s25
      %s26 = sphi 0, %s23
      %s27 = sphi 0, %s26
      %s43 = sphi 0, %s27
      %s49 = sphi 0, %s51
      %s52 = sphi 0, %s49
      %s53 = sphi 0, %s52
      %s69 = sphi 0, %s53
    $region4: #{tpu_custom_call.1} parent=1 // loop_header_branch
      %16 = sbr.rel (%p14) target = $region8
    $region5: #{tpu_custom_call.1} parent=1 // loop_body
      %s18 = ssub.s32 %s13, 1
      %s19 = ssub.s32 %s13, 2
      %s20 = sadd.s32 %s13, 1
      %s21 = ssub.s32 %s13, %s20
      %p22 = scmp.eq.s32.totalorder %s21, 0
      %s24 = sadd.s32 %s23, 1
      %s25 = scalar_select %p22, %s23, %s24
      %p28 = pneg %p22
      %p29 = scmp.eq.s32.totalorder %s13, 1
      %p30 = por %p28, %p29
      %p31 = scmp.ne.s32.totalorder %s23, %s26
      %p32 = scmp.eq.s32.totalorder %s13, 0
      %p33 = por %p31, %p32
      %p34 = scmp.ne.s32.totalorder %s23, %s26
      %p35 = scmp.eq.s32.totalorder %s18, 1
      %p36 = por %p34, %p35
      %p37 = scmp.ne.s32.totalorder %s26, %s27
      %p38 = scmp.eq.s32.totalorder %s18, 0
      %p39 = por %p37, %p38
      %p40 = scmp.ne.s32.totalorder %s26, %s27
      %p41 = scmp.eq.s32.totalorder %s19, 1
      %p42 = por %p40, %p41
      %p44 = scmp.ne.s32.totalorder %s27, %s43
      %p45 = scmp.eq.s32.totalorder %s19, 0
      %p46 = por %p44, %p45
      %s47 = ssub.s32 %s13, %s20
      %p48 = scmp.eq.s32.totalorder %s47, 0
      %s50 = sadd.s32 %s49, 1
      %s51 = scalar_select %p48, %s49, %s50
      %p54 = pneg %p48
      %p55 = scmp.eq.s32.totalorder %s13, 1
      %p56 = por %p54, %p55
      %p57 = scmp.ne.s32.totalorder %s49, %s52
      %p58 = scmp.eq.s32.totalorder %s13, 0
      %p59 = por %p57, %p58
      %p60 = scmp.ne.s32.totalorder %s49, %s52
      %p61 = scmp.eq.s32.totalorder %s18, 1
      %p62 = por %p60, %p61
      %p63 = scmp.ne.s32.totalorder %s52, %s53
      %p64 = scmp.eq.s32.totalorder %s18, 0
      %p65 = por %p63, %p64
      %p66 = scmp.ne.s32.totalorder %s52, %s53
      %p67 = scmp.eq.s32.totalorder %s19, 1
      %p68 = por %p66, %p67
      %p70 = scmp.ne.s32.totalorder %s53, %s69
      %p71 = scmp.eq.s32.totalorder %s19, 0
      %p72 = por %p70, %p71
      %p73 = scmp.le.s32.totalorder 1, %s13
      %p74 = scmp.lt.s32.totalorder %s13, 3
      %p75 = pnand %p73, %p74
      %p76 = pneg %p75
      // Predicated region
      $region9: #{tpu_custom_call.1} parent=5 // pred_check
        _
      $region10: #{tpu_custom_call.1} parent=5 // pred_check_branch
        %78 = sbr.rel (%p75) target = $region12
      $region11: #{tpu_custom_call.1} parent=5 // pred_region
        %s79 = ssub.s32 %s13, 1
      $region12: #{tpu_custom_call.1} parent=5 // pred_fallthru
        _
      %p80 = scmp.lt.s32.totalorder %s13, 2
      // Predicated region
      $region13: #{tpu_custom_call.1} parent=5 // pred_check
        %p81 = pneg %p80
      $region14: #{tpu_custom_call.1} parent=5 // pred_check_branch
        %83 = sbr.rel (%p81) target = $region16
      $region15: #{tpu_custom_call.1} parent=5 // pred_region
        // Predicated region
        $region17: #{tpu_custom_call.1} parent=15 // pred_check
          %p84 = pneg %p33
        $region18: #{tpu_custom_call.1} parent=15 // pred_check_branch
          %86 = sbr.rel (%p84) target = $region20
        $region19: #{tpu_custom_call.1} parent=15 // pred_region
          %s87 = sand.u32 %s23, 1
          %s88 = scalar_lea.sflag [#allocation3], %s87
          %s89 = sand.u32 %s23, 1
          %s90 = smul.addr %s89, 128
          %s91 = scalar_lea.vmem [#allocation2], %s90
          %s92 = smul.u32 2, %s13
          %s94 = ssub.s32 2048, 2048
          %95 = vsyncadd %s88, %s94
          %s96 = smul.addr %s92, 8
          %s97 = smul.addr %s96, 128
          %s98 = scalar_lea.hbm %s0, %s97
          %s99 = sshll.u32 %s91, 4
          %s100 = int_to_ptr.vmem [resolvable:$true] %s99
          %105 = dma.hbm_to_vmem [thread:$0]  %s98, 2048, %s100, %s88, 1024, 1024, 64
        $region20: #{tpu_custom_call.1} parent=15 // pred_fallthru
          _
      $region16: #{tpu_custom_call.1} parent=5 // pred_fallthru
        _
      %p106 = scmp.le.s32.totalorder 1, %s13
      %p107 = scmp.lt.s32.totalorder %s13, 3
      %p108 = pnand %p106, %p107
      %p109 = pneg %p108
      // Predicated region
      $region21: #{tpu_custom_call.1} parent=5 // pred_check
        _
      $region22: #{tpu_custom_call.1} parent=5 // pred_check_branch
        %111 = sbr.rel (%p108) target = $region24
      $region23: #{tpu_custom_call.1} parent=5 // pred_region
        %s112 = ssub.s32 %s13, 1
        %s113 = sand.u32 %s26, 1
        %s114 = scalar_lea.sflag [#allocation3], %s113
        %s115 = sand.u32 %s26, 1
        %s116 = smul.addr %s115, 128
        %s117 = scalar_lea.vmem [#allocation2], %s116
        // Predicated region
        $region25: #{tpu_custom_call.1} parent=23 // pred_check
          %p118 = pneg %p39
        $region26: #{tpu_custom_call.1} parent=23 // pred_check_branch
          %120 = sbr.rel (%p118) target = $region28
        $region27: #{tpu_custom_call.1} parent=23 // pred_region
          %121 = dma.done %s114, 2048
        $region28: #{tpu_custom_call.1} parent=23 // pred_fallthru
          _
        %s122 = sand.u32 %s26, 1
        %s123 = scalar_lea.sflag [#allocation3], %s122
        %s124 = sand.u32 %s26, 1
        %s125 = smul.addr %s124, 128
        %s126 = scalar_lea.vmem [#allocation2], %s125
        %p127 = pneg %p39
        %p128 = pneg %p36
        %p129 = pneg %p65
        %p130 = pneg %p62
        %s131 = sand.u32 %s52, 1
        %s132 = scalar_lea.sflag [#allocation4], %s131
        %s133 = sand.u32 %s52, 1
        %s134 = smul.addr %s133, 128
        %s135 = scalar_lea.vmem [#allocation5], %s134
        %s136 = smul.u32 2, %s18
        %s137 = smul.u32 2, %s18
        %v138 = vld [vmem:[%s117] sm:$0xff]
        %v139 = vld [vmem:[%s117 + $0x8] sm:$0xff]
        %v140 = vld [vmem:[%s117 + $0x10] sm:$0xff]
        %v141 = vld [vmem:[%s117 + $0x18] sm:$0xff]
        %v142 = vld [vmem:[%s117 + $0x20] sm:$0xff]
        %v143 = vld [vmem:[%s117 + $0x28] sm:$0xff]
        %v144 = vld [vmem:[%s117 + $0x30] sm:$0xff]
        %v145 = vld [vmem:[%s117 + $0x38] sm:$0xff]
        %v146 = vld [vmem:[%s117 + $0x40] sm:$0xff]
        %v147 = vld [vmem:[%s117 + $0x48] sm:$0xff]
        %v148 = vld [vmem:[%s117 + $0x50] sm:$0xff]
        %v149 = vld [vmem:[%s117 + $0x58] sm:$0xff]
        %v150 = vld [vmem:[%s117 + $0x60] sm:$0xff]
        %v151 = vld [vmem:[%s117 + $0x68] sm:$0xff]
        %v152 = vld [vmem:[%s117 + $0x70] sm:$0xff]
        %v153 = vld [vmem:[%s117 + $0x78] sm:$0xff]
        %154 = vst [vmem:[%s135] sm:$0xff] %v138
        %155 = vst [vmem:[%s135 + $0x8] sm:$0xff] %v139
        %156 = vst [vmem:[%s135 + $0x10] sm:$0xff] %v140
        %157 = vst [vmem:[%s135 + $0x18] sm:$0xff] %v141
        %158 = vst [vmem:[%s135 + $0x20] sm:$0xff] %v142
        %159 = vst [vmem:[%s135 + $0x28] sm:$0xff] %v143
        %160 = vst [vmem:[%s135 + $0x30] sm:$0xff] %v144
        %161 = vst [vmem:[%s135 + $0x38] sm:$0xff] %v145
        %162 = vst [vmem:[%s135 + $0x40] sm:$0xff] %v146
        %163 = vst [vmem:[%s135 + $0x48] sm:$0xff] %v147
        %164 = vst [vmem:[%s135 + $0x50] sm:$0xff] %v148
        %165 = vst [vmem:[%s135 + $0x58] sm:$0xff] %v149
        %166 = vst [vmem:[%s135 + $0x60] sm:$0xff] %v150
        %167 = vst [vmem:[%s135 + $0x68] sm:$0xff] %v151
        %168 = vst [vmem:[%s135 + $0x70] sm:$0xff] %v152
        %169 = vst [vmem:[%s135 + $0x78] sm:$0xff] %v153
        %s170 = sand.u32 %s52, 1
        %s171 = scalar_lea.sflag [#allocation4], %s170
        %s172 = sand.u32 %s52, 1
        %s173 = smul.addr %s172, 128
        %s174 = scalar_lea.vmem [#allocation5], %s173
        // Predicated region
        $region29: #{tpu_custom_call.1} parent=23 // pred_check
          %p175 = pneg %p62
        $region30: #{tpu_custom_call.1} parent=23 // pred_check_branch
          %177 = sbr.rel (%p175) target = $region32
        $region31: #{tpu_custom_call.1} parent=23 // pred_region
          %s178 = smul.u32 2, %s18
          %s180 = ssub.s32 2048, 2048
          %181 = vsyncadd %s171, %s180
          %s182 = smul.addr %s178, 8
          %s183 = smul.addr %s182, 128
          %s184 = scalar_lea.hbm %s1, %s183
          %s185 = sshll.u32 %s174, 4
          %s186 = int_to_ptr.vmem [resolvable:$true] %s185
          %191 = dma.vmem_to_hbm [thread:$0]  %s186, 2048, %s184, %s171, 1024, 1024, 64
        $region32: #{tpu_custom_call.1} parent=23 // pred_fallthru
          _
      $region24: #{tpu_custom_call.1} parent=5 // pred_fallthru
        _
      %p192 = scmp.le.s32.totalorder 2, %s13
      // Predicated region
      $region33: #{tpu_custom_call.1} parent=5 // pred_check
        %p193 = pneg %p192
      $region34: #{tpu_custom_call.1} parent=5 // pred_check_branch
        %195 = sbr.rel (%p193) target = $region36
      $region35: #{tpu_custom_call.1} parent=5 // pred_region
        %s196 = ssub.s32 %s13, 2
        // Predicated region
        $region37: #{tpu_custom_call.1} parent=35 // pred_check
          %p197 = pneg %p68
        $region38: #{tpu_custom_call.1} parent=35 // pred_check_branch
          %199 = sbr.rel (%p197) target = $region40
        $region39: #{tpu_custom_call.1} parent=35 // pred_region
          %s200 = sand.u32 %s53, 1
          %s201 = scalar_lea.sflag [#allocation4], %s200
          %s202 = sand.u32 %s53, 1
          %s203 = smul.addr %s202, 128
          %s204 = scalar_lea.vmem [#allocation5], %s203
          %205 = dma.done %s201, 2048
        $region40: #{tpu_custom_call.1} parent=35 // pred_fallthru
          _
      $region36: #{tpu_custom_call.1} parent=5 // pred_fallthru
        _
    $region6: #{tpu_custom_call.1} parent=1 // loop_footer
      %s17 = sadd.s32 1, %s13
    $region7: #{tpu_custom_call.1} parent=1 // loop_footer_branch
      %12 = sbr.rel target = $region3
    $region8: #{tpu_custom_call.1} parent=1 // loop_exit
      _
    %206 = vsyncpa [#allocation3], 1
    %s207 = scalar_lea.sflag [#allocation3], 1
    %208 = vsyncpa %s207, 1
    %209 = vsyncpa [#allocation4], 1
    %s210 = scalar_lea.sflag [#allocation4], 1
    %211 = vsyncpa %s210, 1

</llo_original>
